<compile_context>
chip_gen: v6e
topology: v6e:2x2x1
jax: 0.10.0
libtpu: 0.0.40
codegen_flags: <defaults>
</compile_context>

<pallas_src>
import functools

import numpy as np
import jax
import jax.numpy as jnp
from jax.experimental import pallas as pl
from jax.experimental.pallas import tpu as pltpu


# ----------------------------------------------------------------------------
# Host-side glue: distance maps (same semantics as one_hot2dist / distmap).
# TODO(synk): the euclidean distance transform has no clean Pallas equivalent;
# it stays as host-side numpy, matching the original module's .cpu() path.
# ----------------------------------------------------------------------------
def _edt(mask: np.ndarray) -> np.ndarray:
    """Exact EDT: for every pixel, distance to the nearest False pixel."""
    mask = mask.astype(bool)
    h, w = mask.shape
    ys, xs = np.nonzero(~mask)
    if ys.size == 0:  # no background anywhere -> zeros
        return np.zeros(mask.shape, dtype=np.float64)
    yy, xx = np.meshgrid(np.arange(h), np.arange(w), indexing="ij")
    d2 = (yy[..., None] - ys[None, None, :]) ** 2 + (xx[..., None] - xs[None, None, :]) ** 2
    return np.sqrt(d2.min(axis=-1))


def one_hot2dist(seg: np.ndarray) -> np.ndarray:
    res = np.zeros(seg.shape, dtype=np.float32)
    for c in range(seg.shape[0]):
        posmask = seg[c].astype(bool)
        if posmask.any():
            negmask = ~posmask
            res[c] = _edt(negmask) * negmask - (_edt(posmask) - 1.0) * posmask
    return res


def distmap(t: np.ndarray) -> np.ndarray:
    t = np.asarray(t)
    outs = np.zeros(t.shape, dtype=np.float32)
    if t.ndim == 4:
        for b in range(t.shape[0]):
            outs[b] = one_hot2dist(t[b])
        return outs
    if t.ndim == 3:
        return one_hot2dist(t)
    return outs


# ----------------------------------------------------------------------------
# Pallas kernel: per (batch, channel) accumulate sum(sigmoid(x)*dist) over
# spatial tiles into a resident (1,1) output block; weight/normalize at the end.
# ----------------------------------------------------------------------------
def _surface_loss_kernel(x_ref, d_ref, o_ref, *, w0, w1, inv_denom):
    ch = pl.program_id(1)
    j = pl.program_id(2)

    @pl.when(j == 0)
    def _init():
        o_ref[...] = jnp.zeros_like(o_ref)

    # Hot path: upcast + sigmoid (EUP) + mul (VPU) + tile reduce (XLU).
    x = x_ref[...].astype(jnp.float32)                 # (th, W)
    d = d_ref[...].astype(jnp.float32)
    prod = jax.nn.sigmoid(x) * d
    s = jnp.sum(prod, axis=-1, keepdims=True)          # lane reduce   -> (th, 1)
    s = jnp.sum(s, axis=-2, keepdims=True)             # sublane reduce -> (1, 1)
    o_ref[...] += s

    @pl.when(j == pl.num_programs(2) - 1)
    def _finalize():
        wt = jnp.where(ch == 0, jnp.float32(w0), jnp.float32(w1))
        o_ref[...] = o_ref[...] * (wt * jnp.float32(inv_denom))


def _choose_row_tile(h, w, esize, cap_bytes=2 * 1024 * 1024):
    """Largest H tile (full H, or a divisor of H that is a multiple of 8) whose
    buffer stays under cap_bytes (keeps double-buffered inputs v7x-VMEM safe)."""
    if h * w * esize <= cap_bytes:
        return h
    fits = [th for th in range(8, h, 8) if h % th == 0 and th * w * esize <= cap_bytes]
    return max(fits) if fits else h


def surface_loss(inputs, dist_maps, w=1.0, sw=0.1):
    """inputs, dist_maps: (B, C, H, W) with C >= 2. Returns scalar f32 loss."""
    b, c, h, wd = inputs.shape
    assert c >= 2, "SurfaceLoss reads channels 0 and 1"
    assert dist_maps.shape == inputs.shape

    esize = max(inputs.dtype.itemsize, dist_maps.dtype.itemsize)
    th = _choose_row_tile(h, wd, esize)
    n_j = h // th

    kern = functools.partial(
        _surface_loss_kernel,
        w0=float(w), w1=float(w) * float(sw),
        inv_denom=1.0 / float(b * h * wd),
    )
    # Leading (batch, channel) dims are squeezed; only channels 0/1 are fetched.
    x_spec = pl.BlockSpec((None, None, th, wd), lambda bi, ci, j: (bi, ci, j, 0))
    d_spec = pl.BlockSpec((None, None, th, wd), lambda bi, ci, j: (bi, ci, j, 0))
    out = pl.pallas_call(
        kern,
        out_shape=jax.ShapeDtypeStruct((b, 2, 1, 1), jnp.float32),
        grid_spec=pltpu.PrefetchScalarGridSpec(
            num_scalar_prefetch=0,
            grid=(b, 2, n_j),
            in_specs=[x_spec, d_spec],
            out_specs=pl.BlockSpec((None, None, 1, 1),
                                   lambda bi, ci, j: (bi, ci, 0, 0)),
        ),
        compiler_params=pltpu.CompilerParams(
            dimension_semantics=("parallel", "parallel", "arbitrary")),
    )(inputs, dist_maps)

    # out[b, ch] already carries the per-(b, ch) weighted mean contribution.
    return jnp.sum(out)


# ----------------------------------------------------------------------------
# Demo / self-check
# ----------------------------------------------------------------------------
if __name__ == "__main__":
    B, C, H, W = 2, 4, 16, 16  # loss reads channels 0 and 1; extras never DMA'd
    key = jax.random.PRNGKey(0)
    k1, k2 = jax.random.split(key)

    inputs = jax.random.normal(k1, (B, C, H, W), dtype=jnp.float32)
    target = (jax.random.uniform(k2, (B, C, H, W)) < 0.3).astype(jnp.float32)

    # Host-side distance maps (same as the PyTorch module's .cpu() numpy path).
    dist = jnp.asarray(distmap(np.asarray(target)), dtype=jnp.float32)

    loss = surface_loss(inputs, dist, w=1.0, sw=0.1)
    loss = jax.block_until_ready(loss)

    # Plain-JAX reference of the forward pass.
    pc = jax.nn.sigmoid(inputs.astype(jnp.float32))
    per = (pc * dist).mean(axis=2).mean(axis=2)            # (B, C)
    ref = 1.0 * (per[:, 0].mean() + 0.1 * per[:, 1].mean())

    assert abs(float(loss) - float(ref)) < 1e-4 * max(1.0, abs(float(ref))), (
        float(loss), float(ref))
    print("KERNEL_OK")
</pallas_src>

<mosaic_0001>
module attributes {stable_mosaic.version = 11 : i64} {
  func.func @_surface_loss_kernel(%arg0: i32, %arg1: i32, %arg2: i32, %arg3: memref<1x1x16x16xf32, #tpu.memory_space<vmem>>, %arg4: memref<1x1x16x16xf32, #tpu.memory_space<vmem>>, %arg5: memref<1x1x1x1xf32, #tpu.memory_space<vmem>>) attributes {dimension_semantics = [#tpu.dimension_semantics<parallel>, #tpu.dimension_semantics<parallel>, #tpu.dimension_semantics<arbitrary>], iteration_bounds = array<i64: 2, 2, 1>, scalar_prefetch = 0 : i64, scratch_operands = 0 : i64, tpu.core_type = #tpu.core_type<tc>, window_params = [{transform_indices = @transform_0, window_bounds = array<i64: 1, 1, 16, 16>}, {transform_indices = @transform_1, window_bounds = array<i64: 1, 1, 16, 16>}, {transform_indices = @transform_2, window_bounds = array<i64: 1, 1, 1, 1>}]} {
    %c0_i32 = arith.constant 0 : i32
    %0 = arith.cmpi eq, %arg2, %c0_i32 : i32
    %1 = arith.extui %0 : i1 to i32
    %c0_i32_0 = arith.constant 0 : i32
    %2 = arith.cmpi ne, %1, %c0_i32_0 : i32
    scf.if %2 {
      %cst_20 = arith.constant 0.000000e+00 : f32
      %26 = vector.broadcast %cst_20 : f32 to vector<1x1xf32>
      %c0_21 = arith.constant 0 : index
      %c0_22 = arith.constant 0 : index
      %c0_23 = arith.constant 0 : index
      %c0_24 = arith.constant 0 : index
      %27 = vector.load %arg5[%c0_21, %c0_22, %c0_23, %c0_24] : memref<1x1x1x1xf32, #tpu.memory_space<vmem>>, vector<1x1x1x1xf32>
      %28 = vector.shape_cast %27 : vector<1x1x1x1xf32> to vector<1x1xf32>
      %29 = vector.shape_cast %26 : vector<1x1xf32> to vector<1x1x1x1xf32>
      tpu.vector_store %arg5[%c0_21, %c0_22, %c0_23, %c0_24], %29 {strides = array<i32>} : memref<1x1x1x1xf32, #tpu.memory_space<vmem>>, vector<1x1x1x1xf32>,
    } else {
    }
    %c0 = arith.constant 0 : index
    %c0_1 = arith.constant 0 : index
    %c0_2 = arith.constant 0 : index
    %c0_3 = arith.constant 0 : index
    %3 = vector.load %arg3[%c0, %c0_1, %c0_2, %c0_3] : memref<1x1x16x16xf32, #tpu.memory_space<vmem>>, vector<1x1x16x16xf32>
    %4 = vector.shape_cast %3 : vector<1x1x16x16xf32> to vector<16x16xf32>
    %c0_4 = arith.constant 0 : index
    %c0_5 = arith.constant 0 : index
    %c0_6 = arith.constant 0 : index
    %c0_7 = arith.constant 0 : index
    %5 = vector.load %arg4[%c0_4, %c0_5, %c0_6, %c0_7] : memref<1x1x16x16xf32, #tpu.memory_space<vmem>>, vector<1x1x16x16xf32>
    %6 = vector.shape_cast %5 : vector<1x1x16x16xf32> to vector<16x16xf32>
    %7 = arith.negf %4 : vector<16x16xf32>
    %8 = math.exp %7 : vector<16x16xf32>
    %cst = arith.constant 1.000000e+00 : f32
    %9 = vector.broadcast %cst : f32 to vector<16x16xf32>
    %10 = arith.addf %9, %8 : vector<16x16xf32>
    %11 = arith.divf %9, %10 : vector<16x16xf32>
    %12 = arith.mulf %11, %6 : vector<16x16xf32>
    %cst_8 = arith.constant dense<0.000000e+00> : vector<16xf32>
    %13 = vector.multi_reduction <add>, %12, %cst_8 [1] : vector<16x16xf32> to vector<16xf32>
    %14 = vector.shape_cast %13 : vector<16xf32> to vector<16x1xf32>
    %cst_9 = arith.constant dense<0.000000e+00> : vector<1xf32>
    %15 = vector.multi_reduction <add>, %14, %cst_9 [0] : vector<16x1xf32> to vector<1xf32>
    %16 = vector.shape_cast %15 : vector<1xf32> to vector<1x1xf32>
    %c0_10 = arith.constant 0 : index
    %c0_11 = arith.constant 0 : index
    %c0_12 = arith.constant 0 : index
    %c0_13 = arith.constant 0 : index
    %17 = vector.load %arg5[%c0_10, %c0_11, %c0_12, %c0_13] : memref<1x1x1x1xf32, #tpu.memory_space<vmem>>, vector<1x1x1x1xf32>
    %18 = vector.shape_cast %17 : vector<1x1x1x1xf32> to vector<1x1xf32>
    %19 = arith.addf %18, %16 : vector<1x1xf32>
    %c0_14 = arith.constant 0 : index
    %c0_15 = arith.constant 0 : index
    %c0_16 = arith.constant 0 : index
    %c0_17 = arith.constant 0 : index
    %20 = vector.load %arg5[%c0_14, %c0_15, %c0_16, %c0_17] : memref<1x1x1x1xf32, #tpu.memory_space<vmem>>, vector<1x1x1x1xf32>
    %21 = vector.shape_cast %20 : vector<1x1x1x1xf32> to vector<1x1xf32>
    %22 = vector.shape_cast %19 : vector<1x1xf32> to vector<1x1x1x1xf32>
    tpu.vector_store %arg5[%c0_14, %c0_15, %c0_16, %c0_17], %22 {strides = array<i32>} : memref<1x1x1x1xf32, #tpu.memory_space<vmem>>, vector<1x1x1x1xf32>,
    %c0_i32_18 = arith.constant 0 : i32
    %23 = arith.cmpi eq, %arg2, %c0_i32_18 : i32
    %24 = arith.extui %23 : i1 to i32
    %c0_i32_19 = arith.constant 0 : i32
    %25 = arith.cmpi ne, %24, %c0_i32_19 : i32
    scf.if %25 {
      %c0_i32_20 = arith.constant 0 : i32
      %26 = arith.cmpi eq, %arg1, %c0_i32_20 : i32
      %cst_21 = arith.constant 1.000000e+00 : f32
      %cst_22 = arith.constant 1.000000e-01 : f32
      %27 = arith.select %26, %cst_21, %cst_22 : f32
      %c0_23 = arith.constant 0 : index
      %c0_24 = arith.constant 0 : index
      %c0_25 = arith.constant 0 : index
      %c0_26 = arith.constant 0 : index
      %28 = vector.load %arg5[%c0_23, %c0_24, %c0_25, %c0_26] : memref<1x1x1x1xf32, #tpu.memory_space<vmem>>, vector<1x1x1x1xf32>
      %29 = vector.shape_cast %28 : vector<1x1x1x1xf32> to vector<1x1xf32>
      %cst_27 = arith.constant 0.001953125 : f32
      %30 = arith.mulf %27, %cst_27 : f32
      %31 = vector.broadcast %30 : f32 to vector<1x1xf32>
      %32 = arith.mulf %29, %31 : vector<1x1xf32>
      %c0_28 = arith.constant 0 : index
      %c0_29 = arith.constant 0 : index
      %c0_30 = arith.constant 0 : index
      %c0_31 = arith.constant 0 : index
      %33 = vector.load %arg5[%c0_28, %c0_29, %c0_30, %c0_31] : memref<1x1x1x1xf32, #tpu.memory_space<vmem>>, vector<1x1x1x1xf32>
      %34 = vector.shape_cast %33 : vector<1x1x1x1xf32> to vector<1x1xf32>
      %35 = vector.shape_cast %32 : vector<1x1xf32> to vector<1x1x1x1xf32>
      tpu.vector_store %arg5[%c0_28, %c0_29, %c0_30, %c0_31], %35 {strides = array<i32>} : memref<1x1x1x1xf32, #tpu.memory_space<vmem>>, vector<1x1x1x1xf32>,
    } else {
    }
    return
  }
  func.func @transform_0(%arg0: i32, %arg1: i32, %arg2: i32) -> (i32, i32, i32, i32) {
    %c0_i32 = arith.constant 0 : i32
    %c0_i32_0 = arith.constant 0 : i32
    return %arg0, %arg1, %arg2, %c0_i32 : i32, i32, i32, i32
  }
  func.func @transform_1(%arg0: i32, %arg1: i32, %arg2: i32) -> (i32, i32, i32, i32) {
    %c0_i32 = arith.constant 0 : i32
    %c0_i32_0 = arith.constant 0 : i32
    return %arg0, %arg1, %arg2, %c0_i32 : i32, i32, i32, i32
  }
  func.func @transform_2(%arg0: i32, %arg1: i32, %arg2: i32) -> (i32, i32, i32, i32) {
    %c0_i32 = arith.constant 0 : i32
    %c0_i32_0 = arith.constant 0 : i32
    %c0_i32_1 = arith.constant 0 : i32
    return %arg0, %arg1, %c0_i32, %c0_i32_0 : i32, i32, i32, i32
  }
}

</mosaic_0001>

<llo_original>
// kernel: tpu_custom_call.1
$region0: #{tpu_custom_call.1}
  #allocation0 [shape = 'u32[]', space=smem, size = 0x4, offset = 0x4, fixed_abs, tag = 'smem constant byte address 0x4 - core index']
  #allocation1 [shape = 'u32[144,128]{1,0:T(1,128)}', space=vmem, size = 0x12000, scoped, tag = 'internal scratch']
  %s0 = inlined_call_operand.hbm [shape: f32[2,4,16,16], index: 0, kind: input, shape index: {}]
  %s1 = inlined_call_operand.hbm [shape: f32[2,4,16,16], index: 1, kind: input, shape index: {}]
  %s2 = inlined_call_operand.vmem [shape: f32[2,2,1,1], index: 2, kind: output, shape index: {}]
  %s3 = sld [smem:[#allocation0]]
  $region57: #{tpu_custom_call.1} parent=0
    _
  %s5 = ssub.s32 1, %s3
  %s6 = scalar_select 0, %s5, %s3
  $region1: #{tpu_custom_call.1} parent=0
    #allocation2 [shape = 'u8[16384]{0}', space=vmem, size = 0x4000, scoped, tag = 'input window, operand 0']
    #allocation3 [shape = 's32[2]{0}', space=sflag, size = 0x8, scoped, tag = 'scoped memory for tpu_custom_call.1']
    #allocation4 [shape = 'u8[16384]{0}', space=vmem, size = 0x4000, scoped, tag = 'input window, operand 1']
    #allocation5 [shape = 's32[2]{0}', space=sflag, size = 0x8, scoped, tag = 'scoped memory for tpu_custom_call.1']
    %7 = vsyncpa [#allocation3], 0
    %s8 = scalar_lea.sflag [#allocation3], 1
    %9 = vsyncpa %s8, 0
    %10 = vsyncpa [#allocation5], 0
    %s11 = scalar_lea.sflag [#allocation5], 1
    %12 = vsyncpa %s11, 0
    loop: start=0, step=1, limit=6
    $region2: #{tpu_custom_call.1} parent=1 // loop_pre_header
      _
    $region3: #{tpu_custom_call.1} parent=1 // loop_header
      %s14 = sphi 0, %s18
      %p15 = scmp.ge.s32.totalorder %s14, 6
      %s21 = sphi 0, %s40
      %s22 = sphi 0, %s36
      %s23 = sphi 0, %s32
      %s24 = sphi 0, %s21
      %s25 = sphi 0, %s22
      %s26 = sphi 0, %s23
      %s27 = sphi 0, %s24
      %s28 = sphi 0, %s25
      %s29 = sphi 0, %s26
      %s47 = sphi 0, %s49
      %s50 = sphi 0, %s47
      %s51 = sphi 0, %s50
      %s67 = sphi 0, %s51
      %s77 = sphi 0, %s79
      %s80 = sphi 0, %s77
      %s81 = sphi 0, %s80
      %s97 = sphi 0, %s81
      %s105 = sphi 0, %s107
      %s108 = sphi 0, %s105
      %s109 = sphi 0, %s108
      %s125 = sphi 0, %s109
    $region4: #{tpu_custom_call.1} parent=1 // loop_header_branch
      %17 = sbr.rel (%p15) target = $region8
    $region5: #{tpu_custom_call.1} parent=1 // loop_body
      %s19 = ssub.s32 %s14, 1
      %s20 = ssub.s32 %s14, 2
      %s30 = sadd.s32 1, %s23
      %p31 = scmp.ge.s32.totalorder %s30, 1
      %s32 = scalar_select %p31, 0, %s30
      %s33 = sadd.s32 1, %s22
      %s34 = scalar_select %p31, %s33, %s22
      %p35 = scmp.ge.s32.totalorder %s34, 2
      %s36 = scalar_select %p35, 0, %s34
      %s37 = sadd.s32 1, %s21
      %s38 = scalar_select %p35, %s37, %s21
      %p39 = scmp.ge.s32.totalorder %s38, 2
      %s40 = scalar_select %p39, 0, %s38
      %s41 = ssub.s32 %s21, %s40
      %s42 = ssub.s32 %s22, %s36
      %s43 = sor.u32 %s41, %s42
      %s44 = ssub.s32 %s23, %s32
      %s45 = sor.u32 %s43, %s44
      %p46 = scmp.eq.s32.totalorder %s45, 0
      %s48 = sadd.s32 %s47, 1
      %s49 = scalar_select %p46, %s47, %s48
      %p52 = pneg %p46
      %p53 = scmp.eq.s32.totalorder %s14, 3
      %p54 = por %p52, %p53
      %p55 = scmp.ne.s32.totalorder %s47, %s50
      %p56 = scmp.eq.s32.totalorder %s14, 0
      %p57 = por %p55, %p56
      %p58 = scmp.ne.s32.totalorder %s47, %s50
      %p59 = scmp.eq.s32.totalorder %s19, 3
      %p60 = por %p58, %p59
      %p61 = scmp.ne.s32.totalorder %s50, %s51
      %p62 = scmp.eq.s32.totalorder %s19, 0
      %p63 = por %p61, %p62
      %p64 = scmp.ne.s32.totalorder %s50, %s51
      %p65 = scmp.eq.s32.totalorder %s20, 3
      %p66 = por %p64, %p65
      %p68 = scmp.ne.s32.totalorder %s51, %s67
      %p69 = scmp.eq.s32.totalorder %s20, 0
      %p70 = por %p68, %p69
      %s71 = ssub.s32 %s21, %s40
      %s72 = ssub.s32 %s22, %s36
      %s73 = sor.u32 %s71, %s72
      %s74 = ssub.s32 %s23, %s32
      %s75 = sor.u32 %s73, %s74
      %p76 = scmp.eq.s32.totalorder %s75, 0
      %s78 = sadd.s32 %s77, 1
      %s79 = scalar_select %p76, %s77, %s78
      %p82 = pneg %p76
      %p83 = scmp.eq.s32.totalorder %s14, 3
      %p84 = por %p82, %p83
      %p85 = scmp.ne.s32.totalorder %s77, %s80
      %p86 = scmp.eq.s32.totalorder %s14, 0
      %p87 = por %p85, %p86
      %p88 = scmp.ne.s32.totalorder %s77, %s80
      %p89 = scmp.eq.s32.totalorder %s19, 3
      %p90 = por %p88, %p89
      %p91 = scmp.ne.s32.totalorder %s80, %s81
      %p92 = scmp.eq.s32.totalorder %s19, 0
      %p93 = por %p91, %p92
      %p94 = scmp.ne.s32.totalorder %s80, %s81
      %p95 = scmp.eq.s32.totalorder %s20, 3
      %p96 = por %p94, %p95
      %p98 = scmp.ne.s32.totalorder %s81, %s97
      %p99 = scmp.eq.s32.totalorder %s20, 0
      %p100 = por %p98, %p99
      %s101 = ssub.s32 %s21, %s40
      %s102 = ssub.s32 %s22, %s36
      %s103 = sor.u32 %s101, %s102
      %p104 = scmp.eq.s32.totalorder %s103, 0
      %s106 = sadd.s32 %s105, 1
      %s107 = scalar_select %p104, %s105, %s106
      %p110 = pneg %p104
      %p111 = scmp.eq.s32.totalorder %s14, 3
      %p112 = por %p110, %p111
      %p113 = scmp.ne.s32.totalorder %s105, %s108
      %p114 = scmp.eq.s32.totalorder %s14, 0
      %p115 = por %p113, %p114
      %p116 = scmp.ne.s32.totalorder %s105, %s108
      %p117 = scmp.eq.s32.totalorder %s19, 3
      %p118 = por %p116, %p117
      %p119 = scmp.ne.s32.totalorder %s108, %s109
      %p120 = scmp.eq.s32.totalorder %s19, 0
      %p121 = por %p119, %p120
      %p122 = scmp.ne.s32.totalorder %s108, %s109
      %p123 = scmp.eq.s32.totalorder %s20, 3
      %p124 = por %p122, %p123
      %p126 = scmp.ne.s32.totalorder %s109, %s125
      %p127 = scmp.eq.s32.totalorder %s20, 0
      %p128 = por %p126, %p127
      %p129 = scmp.le.s32.totalorder 1, %s14
      %p130 = scmp.lt.s32.totalorder %s14, 5
      %p131 = pnand %p129, %p130
      %p132 = pneg %p131
      // Predicated region
      $region9: #{tpu_custom_call.1} parent=5 // pred_check
        _
      $region10: #{tpu_custom_call.1} parent=5 // pred_check_branch
        %134 = sbr.rel (%p131) target = $region12
      $region11: #{tpu_custom_call.1} parent=5 // pred_region
        %s135 = ssub.s32 %s14, 1
      $region12: #{tpu_custom_call.1} parent=5 // pred_fallthru
        _
      %p136 = scmp.lt.s32.totalorder %s14, 4
      // Predicated region
      $region13: #{tpu_custom_call.1} parent=5 // pred_check
        %p137 = pneg %p136
      $region14: #{tpu_custom_call.1} parent=5 // pred_check_branch
        %139 = sbr.rel (%p137) target = $region16
      $region15: #{tpu_custom_call.1} parent=5 // pred_region
        // Predicated region
        $region17: #{tpu_custom_call.1} parent=15 // pred_check
          %p140 = pneg %p57
        $region18: #{tpu_custom_call.1} parent=15 // pred_check_branch
          %142 = sbr.rel (%p140) target = $region20
        $region19: #{tpu_custom_call.1} parent=15 // pred_region
          %s143 = sand.u32 %s47, 1
          %s144 = scalar_lea.sflag [#allocation3], %s143
          %s145 = sand.u32 %s47, 1
          %s146 = smul.addr %s145, 16
          %s147 = scalar_lea.vmem [#allocation2], %s146
          %s148 = smul.u32 2, %s23
          %s150 = ssub.s32 256, 256
          %151 = vsyncadd %s144, %s150
          %s152 = smul.addr %s22, 2
          %s153 = sadd.s32 %s148, %s152
          %s154 = smul.addr %s21, 8
          %s155 = sadd.s32 %s153, %s154
          %s156 = smul.addr %s155, 128
          %s157 = scalar_lea.hbm %s0, %s156
          %s158 = sshll.u32 %s147, 4
          %s159 = int_to_ptr.vmem [resolvable:$true] %s158
          %164 = dma.hbm_to_vmem [thread:$0]  %s157, 256, %s159, %s144, 128, 128, 8
        $region20: #{tpu_custom_call.1} parent=15 // pred_fallthru
          _
        // Predicated region
        $region21: #{tpu_custom_call.1} parent=15 // pred_check
          %p165 = pneg %p87
        $region22: #{tpu_custom_call.1} parent=15 // pred_check_branch
          %167 = sbr.rel (%p165) target = $region24
        $region23: #{tpu_custom_call.1} parent=15 // pred_region
          %s168 = sand.u32 %s77, 1
          %s169 = scalar_lea.sflag [#allocation5], %s168
          %s170 = sand.u32 %s77, 1
          %s171 = smul.addr %s170, 16
          %s172 = scalar_lea.vmem [#allocation4], %s171
          %s173 = smul.u32 2, %s23
          %s175 = ssub.s32 256, 256
          %176 = vsyncadd %s169, %s175
          %s177 = smul.addr %s22, 2
          %s178 = sadd.s32 %s173, %s177
          %s179 = smul.addr %s21, 8
          %s180 = sadd.s32 %s178, %s179
          %s181 = smul.addr %s180, 128
          %s182 = scalar_lea.hbm %s1, %s181
          %s183 = sshll.u32 %s172, 4
          %s184 = int_to_ptr.vmem [resolvable:$true] %s183
          %189 = dma.hbm_to_vmem [thread:$0]  %s182, 256, %s184, %s169, 128, 128, 8
        $region24: #{tpu_custom_call.1} parent=15 // pred_fallthru
          _
      $region16: #{tpu_custom_call.1} parent=5 // pred_fallthru
        _
      %p190 = scmp.le.s32.totalorder 1, %s14
      %p191 = scmp.lt.s32.totalorder %s14, 5
      %p192 = pnand %p190, %p191
      %p193 = pneg %p192
      // Predicated region
      $region25: #{tpu_custom_call.1} parent=5 // pred_check
        _
      $region26: #{tpu_custom_call.1} parent=5 // pred_check_branch
        %195 = sbr.rel (%p192) target = $region28
      $region27: #{tpu_custom_call.1} parent=5 // pred_region
        %s196 = ssub.s32 %s14, 1
        %s197 = sand.u32 %s50, 1
        %s198 = scalar_lea.sflag [#allocation3], %s197
        %s199 = sand.u32 %s50, 1
        %s200 = smul.addr %s199, 16
        %s201 = scalar_lea.vmem [#allocation2], %s200
        // Predicated region
        $region29: #{tpu_custom_call.1} parent=27 // pred_check
          %p202 = pneg %p63
        $region30: #{tpu_custom_call.1} parent=27 // pred_check_branch
          %204 = sbr.rel (%p202) target = $region32
        $region31: #{tpu_custom_call.1} parent=27 // pred_region
          %205 = dma.done %s198, 256
        $region32: #{tpu_custom_call.1} parent=27 // pred_fallthru
          _
        %s206 = sand.u32 %s80, 1
        %s207 = scalar_lea.sflag [#allocation5], %s206
        %s208 = sand.u32 %s80, 1
        %s209 = smul.addr %s208, 16
        %s210 = scalar_lea.vmem [#allocation4], %s209
        // Predicated region
        $region33: #{tpu_custom_call.1} parent=27 // pred_check
          %p211 = pneg %p93
        $region34: #{tpu_custom_call.1} parent=27 // pred_check_branch
          %213 = sbr.rel (%p211) target = $region36
        $region35: #{tpu_custom_call.1} parent=27 // pred_region
          %214 = dma.done %s207, 256
        $region36: #{tpu_custom_call.1} parent=27 // pred_fallthru
          _
        %s215 = sand.u32 %s50, 1
        %s216 = scalar_lea.sflag [#allocation3], %s215
        %s217 = sand.u32 %s50, 1
        %s218 = smul.addr %s217, 16
        %s219 = scalar_lea.vmem [#allocation2], %s218
        %p220 = pneg %p63
        %p221 = pneg %p60
        %s222 = sand.u32 %s80, 1
        %s223 = scalar_lea.sflag [#allocation5], %s222
        %s224 = sand.u32 %s80, 1
        %s225 = smul.addr %s224, 16
        %s226 = scalar_lea.vmem [#allocation4], %s225
        %p227 = pneg %p93
        %p228 = pneg %p90
        %p229 = pneg %p121
        %p230 = pneg %p118
        %p231 = scmp.lt.s32.totalorder %s24, 1
        %s232 = scalar_select %p231, %s24, 1
        %p233 = scmp.lt.s32.totalorder %s25, 1
        %s234 = scalar_select %p233, %s25, 1
        %s235 = smul.addr %s232, 2
        %s236 = sadd.s32 %s234, %s235
        %s237 = scalar_lea.vmem %s2, %s236
        %s238 = smul.u32 2, %s26
        %s239 = smul.u32 2, %s26
        %p240 = scmp.lt.s32.totalorder %s24, 1
        %s241 = scalar_select %p240, %s24, 1
        %p242 = scmp.lt.s32.totalorder %s25, 1
        %s243 = scalar_select %p242, %s25, 1
        %s244 = smul.addr %s241, 2
        %s245 = sadd.s32 %s243, %s244
        %s246 = scalar_lea.vmem %s2, %s245
        %p247 = scmp.eq.s32.totalorder %s26, 0
        // Predicated region
        $region37: #{tpu_custom_call.1} parent=27 // pred_check
          %p248 = pneg %p247
        $region38: #{tpu_custom_call.1} parent=27 // pred_check_branch
          %250 = sbr.rel (%p248) target = $region40
        $region39: #{tpu_custom_call.1} parent=27 // pred_region
          %vm251 = vcmask 0
          %252 = vst.msk [vmem:[%s246] sm:$0x1] %vm251, 0.0
        $region40: #{tpu_custom_call.1} parent=27 // pred_fallthru
          _
        %v253 = vld [vmem:[%s201] sm:$0xff]
        %v254 = vld [vmem:[%s201 + $0x8] sm:$0xff]
        %v255 = vld [vmem:[%s210] sm:$0xff]
        %v256 = vld [vmem:[%s210 + $0x8] sm:$0xff]
        %v257 = vxor.u32 %v253, 2147483648
        %v258 = vxor.u32 %v254, 2147483648
        %v259 = vmul.f32 %v257, 1.442695
        %v260 = vpow.pop %v259
        %v261 = vmul.f32 %v258, 1.442695
        %v262 = vpow.pop %v261
        %v263 = vadd.f32 %v260, 1.0
        %v264 = vadd.f32 %v262, 1.0
        %v265 = vrcp.pop %v263
        %v266 = vmul.f32 1.0, %v265
        %v267 = vrcp.pop %v264
        %v268 = vmul.f32 1.0, %v267
        %v269 = vmul.f32 %v266, %v255
        %v270 = vmul.f32 %v268, %v256
        %vm271 = vcmask 130048
        %v272 = vsel %vm271, %v269, 0.0
        %273 = vadd.xlane.f32.xlu0 %v272
        %v274 = vpop.xlane.xlu0 %273
        %v275 = vsel %vm271, %v270, 0.0
        %276 = vadd.xlane.f32.xlu0 %v275
        %v277 = vpop.xlane.xlu0 %276
        %v278 = vadd.f32 %v274, %v277
        %v279 = vrot.slane %v278, 4
        %v280 = vadd.f32 %v278, %v279
        %v281 = vrot.slane %v280, 2
        %v282 = vadd.f32 %v280, %v281
        %v283 = vrot.slane %v282, 1
        %v284 = vadd.f32 %v282, %v283
        %v285 = vld [vmem:[%s246] sm:$0x1]
        %v286 = vadd.f32 %v285, %v284
        %vm287 = vcmask 0
        %288 = vst.msk [vmem:[%s246] sm:$0x1] %vm287, %v286
        // Predicated region
        $region41: #{tpu_custom_call.1} parent=27 // pred_check
          %p289 = pneg %p247
        $region42: #{tpu_custom_call.1} parent=27 // pred_check_branch
          %291 = sbr.rel (%p289) target = $region44
        $region43: #{tpu_custom_call.1} parent=27 // pred_region
          %p292 = scmp.eq.s32.totalorder %s25, 0
          %s293 = scalar_select %p292, 1.0, 0.1
          %v294 = vld [vmem:[%s246] sm:$0x1]
          %s295 = smul.f32 %s293, 0.001953125
          %v296 = vstv %s295
          %v297 = vmul.f32 %v294, %v296
          %298 = vst.msk [vmem:[%s246] sm:$0x1] %vm287, %v297
        $region44: #{tpu_custom_call.1} parent=27 // pred_fallthru
          _
        %p299 = scmp.lt.s32.totalorder %s24, 1
        %s300 = scalar_select %p299, %s24, 1
        %p301 = scmp.lt.s32.totalorder %s25, 1
        %s302 = scalar_select %p301, %s25, 1
        %s303 = smul.addr %s300, 2
        %s304 = sadd.s32 %s302, %s303
        %s305 = scalar_lea.vmem %s2, %s304
        // Predicated region
        $region45: #{tpu_custom_call.1} parent=27 // pred_check
          %p306 = pneg %p118
        $region46: #{tpu_custom_call.1} parent=27 // pred_check_branch
          %308 = sbr.rel (%p306) target = $region48
        $region47: #{tpu_custom_call.1} parent=27 // pred_region
          _
        $region48: #{tpu_custom_call.1} parent=27 // pred_fallthru
          _
      $region28: #{tpu_custom_call.1} parent=5 // pred_fallthru
        _
      %p309 = scmp.le.s32.totalorder 2, %s14
      // Predicated region
      $region49: #{tpu_custom_call.1} parent=5 // pred_check
        %p310 = pneg %p309
      $region50: #{tpu_custom_call.1} parent=5 // pred_check_branch
        %312 = sbr.rel (%p310) target = $region52
      $region51: #{tpu_custom_call.1} parent=5 // pred_region
        %s313 = ssub.s32 %s14, 2
        // Predicated region
        $region53: #{tpu_custom_call.1} parent=51 // pred_check
          %p314 = pneg %p124
        $region54: #{tpu_custom_call.1} parent=51 // pred_check_branch
          %316 = sbr.rel (%p314) target = $region56
        $region55: #{tpu_custom_call.1} parent=51 // pred_region
          %p317 = scmp.lt.s32.totalorder %s27, 1
          %s318 = scalar_select %p317, %s27, 1
          %p319 = scmp.lt.s32.totalorder %s28, 1
          %s320 = scalar_select %p319, %s28, 1
          %s321 = smul.addr %s318, 2
          %s322 = sadd.s32 %s320, %s321
          %s323 = scalar_lea.vmem %s2, %s322
        $region56: #{tpu_custom_call.1} parent=51 // pred_fallthru
          _
      $region52: #{tpu_custom_call.1} parent=5 // pred_fallthru
        _
    $region6: #{tpu_custom_call.1} parent=1 // loop_footer
      %s18 = sadd.s32 1, %s14
    $region7: #{tpu_custom_call.1} parent=1 // loop_footer_branch
      %13 = sbr.rel target = $region3
    $region8: #{tpu_custom_call.1} parent=1 // loop_exit
      _
    %324 = vsyncpa [#allocation3], 1
    %s325 = scalar_lea.sflag [#allocation3], 1
    %326 = vsyncpa %s325, 1
    %327 = vsyncpa [#allocation5], 1
    %s328 = scalar_lea.sflag [#allocation5], 1
    %329 = vsyncpa %s328, 1

</llo_original>
